<compile_context>
chip_gen: v5e
topology: v5e:2x2
jax: 0.10.0
libtpu: 0.0.40
codegen_flags: <defaults>
</compile_context>

<pallas_src>
import numpy as np
import jax
import jax.numpy as jnp
from jax.experimental import pallas as pl
from jax.experimental.pallas import tpu as pltpu

_LANE = 128
_BLOCK_BYTES_CAP = 2 * 1024 * 1024  # ~2 MiB per block buffer


def _drop_path_kernel(scale_ref, x_ref, o_ref):
    # scale_ref: (B, 1) per-batch scale (0.0 or 1/keep_prob), already in x.dtype.
    # x_ref / o_ref: (B, TILE_F) lane-dense slab.  Pure streaming multiply.
    o_ref[...] = x_ref[...] * scale_ref[...]


def drop_path(x, drop_prob: float = 0.0, training: bool = False, seed: int = 0):
    """Pallas equivalent of the PyTorch drop_path()."""
    if drop_prob == 0.0 or not training:
        return x

    orig_shape = x.shape
    B = x.shape[0]
    x2 = x.reshape(B, -1)          # lane-dense (B, F) slab
    F = x2.shape[1]

    keep_prob = 1.0 - float(drop_prob)
    # Per-batch keep decision (matches torch: floor(keep_prob + U[0,1))).
    # TODO(synk): callers must vary `seed` per layer/step (torch uses the global RNG).
    u = jax.random.uniform(jax.random.PRNGKey(seed), (B, 1), dtype=jnp.float32)
    mask = jnp.floor(keep_prob + u)
    scale = (mask / keep_prob).astype(x.dtype)   # 0 or 1/keep_prob, in x.dtype

    itemsize = np.dtype(x.dtype).itemsize
    if F % _LANE == 0:
        # Largest multiple-of-128 tile with block bytes <= cap (>= 128 lanes).
        cap = max(_LANE, ((_BLOCK_BYTES_CAP // (B * itemsize)) // _LANE) * _LANE)
        tile_f = min(F, cap)
    else:
        # Full-extent block bypasses the (8,128) divisibility constraint
        # (small / odd shapes only; accepts masked stores there).
        tile_f = F
    grid_f = pl.cdiv(F, tile_f)

    out = pl.pallas_call(
        _drop_path_kernel,
        out_shape=jax.ShapeDtypeStruct((B, F), x.dtype),
        grid_spec=pltpu.PrefetchScalarGridSpec(
            num_scalar_prefetch=0,
            grid=(grid_f,),
            in_specs=[
                pl.BlockSpec((B, 1), lambda j: (0, 0)),        # per-batch scale
                pl.BlockSpec((B, tile_f), lambda j: (0, j)),   # x tile
            ],
            out_specs=pl.BlockSpec((B, tile_f), lambda j: (0, j)),
        ),
        compiler_params=pltpu.CompilerParams(
            dimension_semantics=("parallel",)),   # F-tiles independent -> megacore ok
    )(scale, x2)

    return out.reshape(orig_shape)


class DropPath:
    """Mirror of the PyTorch DropPath module (no parameters)."""

    def __init__(self, drop_prob=None):
        self.drop_prob = drop_prob
        self.training = True

    def __call__(self, x, seed: int = 0):
        p = 0.0 if self.drop_prob is None else float(self.drop_prob)
        return drop_path(x, p, self.training, seed)


if __name__ == "__main__":
    key = jax.random.PRNGKey(0)
    # (B, N, D) = (2, 8, 32): small token-major activation as fed to DropPath in HVT
    x = jax.random.normal(key, (2, 8, 32), dtype=jnp.float32)

    drop_prob = 0.3
    keep_prob = 1.0 - drop_prob

    mod = DropPath(drop_prob=drop_prob)
    mod.training = True
    y = jax.block_until_ready(mod(x, seed=0))

    # Sanity: each batch slice is either all-zero (dropped) or x / keep_prob (kept).
    xn, yn = np.asarray(x), np.asarray(y)
    for b in range(xn.shape[0]):
        dropped = np.allclose(yn[b], 0.0)
        kept = np.allclose(yn[b], xn[b] / keep_prob, rtol=1e-5, atol=1e-5)
        assert dropped or kept, "per-batch drop-path semantics violated"

    # Eval mode (and drop_prob == 0) is an identity pass-through, like torch.
    mod.training = False
    y_eval = jax.block_until_ready(mod(x, seed=0))
    assert np.allclose(np.asarray(y_eval), xn)

    print("KERNEL_OK")
</pallas_src>

<mosaic_0001>
module attributes {stable_mosaic.version = 11 : i64} {
  func.func @_drop_path_kernel(%arg0: i32, %arg1: memref<2x1xf32, #tpu.memory_space<vmem>>, %arg2: memref<2x256xf32, #tpu.memory_space<vmem>>, %arg3: memref<2x256xf32, #tpu.memory_space<vmem>>) attributes {dimension_semantics = [#tpu.dimension_semantics<parallel>], iteration_bounds = array<i64: 1>, scalar_prefetch = 0 : i64, scratch_operands = 0 : i64, tpu.core_type = #tpu.core_type<tc>, window_params = [{pipeline_mode = #tpu.pipeline_mode<synchronous>, transform_indices = @transform_0, window_bounds = array<i64: 2, 1>}, {transform_indices = @transform_1, window_bounds = array<i64: 2, 256>}, {transform_indices = @transform_2, window_bounds = array<i64: 2, 256>}]} {
    %c0 = arith.constant 0 : index
    %c0_0 = arith.constant 0 : index
    %0 = vector.load %arg2[%c0, %c0_0] : memref<2x256xf32, #tpu.memory_space<vmem>>, vector<2x256xf32>
    %c0_1 = arith.constant 0 : index
    %c0_2 = arith.constant 0 : index
    %1 = vector.load %arg1[%c0_1, %c0_2] : memref<2x1xf32, #tpu.memory_space<vmem>>, vector<2x1xf32>
    %2 = vector.broadcast %1 : vector<2x1xf32> to vector<2x256xf32>
    %3 = arith.mulf %0, %2 : vector<2x256xf32>
    %c0_3 = arith.constant 0 : index
    %c0_4 = arith.constant 0 : index
    %4 = vector.load %arg3[%c0_3, %c0_4] : memref<2x256xf32, #tpu.memory_space<vmem>>, vector<2x256xf32>
    tpu.vector_store %arg3[%c0_3, %c0_4], %3 {strides = array<i32>} : memref<2x256xf32, #tpu.memory_space<vmem>>, vector<2x256xf32>,
    return
  }
  func.func @transform_0(%arg0: i32) -> (i32, i32) {
    %c0_i32 = arith.constant 0 : i32
    %c0_i32_0 = arith.constant 0 : i32
    %c0_i32_1 = arith.constant 0 : i32
    return %c0_i32, %c0_i32_0 : i32, i32
  }
  func.func @transform_1(%arg0: i32) -> (i32, i32) {
    %c0_i32 = arith.constant 0 : i32
    %c0_i32_0 = arith.constant 0 : i32
    return %c0_i32, %arg0 : i32, i32
  }
  func.func @transform_2(%arg0: i32) -> (i32, i32) {
    %c0_i32 = arith.constant 0 : i32
    %c0_i32_0 = arith.constant 0 : i32
    return %c0_i32, %arg0 : i32, i32
  }
}

</mosaic_0001>

<llo_original>
// kernel: tpu_custom_call.1
$region0: #{tpu_custom_call.1}
  #allocation0 [shape = 'u32[]', space=smem, size = 0x4, offset = 0x4, fixed_abs, tag = 'smem constant byte address 0x4 - core index']
  #allocation1 [shape = 'u32[72,128]{1,0:T(1,128)}', space=vmem, size = 0x9000, scoped, tag = 'internal scratch']
  %s0 = inlined_call_operand.vmem [shape: f32[2,1], index: 0, kind: input, shape index: {}]
  %s1 = inlined_call_operand.hbm [shape: f32[2,256], index: 1, kind: input, shape index: {}]
  %s2 = inlined_call_operand.hbm [shape: f32[2,256], index: 2, kind: output, shape index: {}]
  %s3 = sld [smem:[#allocation0]]
  $region22: #{tpu_custom_call.1} parent=0
    _
  %s5 = ssub.s32 1, %s3
  %s6 = scalar_select 0, %s5, %s3
  $region1: #{tpu_custom_call.1} parent=0
    #allocation2 [shape = 'u8[2048]{0}', space=vmem, size = 0x800, scoped, tag = 'input window, operand 1, single buffered']
    #allocation3 [shape = 's32[1]{0}', space=sflag, size = 0x4, scoped, tag = 'scoped memory for tpu_custom_call.1']
    #allocation4 [shape = 's32[1]{0}', space=sflag, size = 0x4, scoped, tag = 'scoped memory for tpu_custom_call.1']
    #allocation5 [shape = 'u8[2048]{0}', space=vmem, size = 0x800, scoped, tag = 'output window, operand 0, single buffered']
    %7 = vsyncpa [#allocation3], 0
    %8 = vsyncpa [#allocation4], 0
    // Predicated region
    $region2: #{tpu_custom_call.1} parent=1 // pred_check
      _
    $region3: #{tpu_custom_call.1} parent=1 // pred_check_branch
      %10 = sbr.rel (0) target = $region5
    $region4: #{tpu_custom_call.1} parent=1 // pred_region
      _
    $region5: #{tpu_custom_call.1} parent=1 // pred_fallthru
      _
    // Predicated region
    $region6: #{tpu_custom_call.1} parent=1 // pred_check
      _
    $region7: #{tpu_custom_call.1} parent=1 // pred_check_branch
      %12 = sbr.rel (0) target = $region9
    $region8: #{tpu_custom_call.1} parent=1 // pred_region
      %14 = vsyncadd [#allocation3], 0
      %s16 = sshll.u32 %s1, 4
      %s17 = int_to_ptr.hbm [resolvable:$true] %s16
      %s18 = sshll.u32 [#allocation2], 4
      %s19 = int_to_ptr.vmem [resolvable:$true] %s18
      %21 = dma.hbm_to_vmem [thread:$0]  %s17, 64, %s19, [#allocation3]
    $region9: #{tpu_custom_call.1} parent=1 // pred_fallthru
      _
    // Predicated region
    $region10: #{tpu_custom_call.1} parent=1 // pred_check
      _
    $region11: #{tpu_custom_call.1} parent=1 // pred_check_branch
      %23 = sbr.rel (0) target = $region13
    $region12: #{tpu_custom_call.1} parent=1 // pred_region
      %25 = dma.done [#allocation3], 64
    $region13: #{tpu_custom_call.1} parent=1 // pred_fallthru
      _
    %v26 = vld [vmem:[#allocation2] sm:$0xf]
    %v27 = vld [vmem:[%s0] sm:$0x3]
    %29 = vset.pattern.permute.xlu0 0
    %30 = vperm.xlu0 %29, %v27
    %v31 = vpop.permute.xlu0 %30
    %v33 = vunpack.c.l.s4 269488144
    %v34 = vunpack.c.0.s8 %v33
    %v35 = vperm.slane %v31, %v34
    %v37 = vmul.f32 %v26, %v35
    %38 = vst [vmem:[#allocation5] sm:$0xf] %v37
    // Predicated region
    $region14: #{tpu_custom_call.1} parent=1 // pred_check
      _
    $region15: #{tpu_custom_call.1} parent=1 // pred_check_branch
      %40 = sbr.rel (0) target = $region17
    $region16: #{tpu_custom_call.1} parent=1 // pred_region
      %42 = vsyncadd [#allocation4], 0
      %s44 = sshll.u32 [#allocation5], 4
      %s45 = int_to_ptr.vmem [resolvable:$true] %s44
      %s46 = sshll.u32 %s2, 4
      %s47 = int_to_ptr.hbm [resolvable:$true] %s46
      %49 = dma.vmem_to_hbm [thread:$0]  %s45, 64, %s47, [#allocation4]
    $region17: #{tpu_custom_call.1} parent=1 // pred_fallthru
      _
    // Predicated region
    $region18: #{tpu_custom_call.1} parent=1 // pred_check
      _
    $region19: #{tpu_custom_call.1} parent=1 // pred_check_branch
      %51 = sbr.rel (0) target = $region21
    $region20: #{tpu_custom_call.1} parent=1 // pred_region
      %53 = dma.done [#allocation4], 64
    $region21: #{tpu_custom_call.1} parent=1 // pred_fallthru
      _
    %54 = vsyncpa [#allocation3], 1
    %55 = vsyncpa [#allocation4], 1

</llo_original>
